<compile_context>
chip_gen: v6e
topology: v6e:2x2x1
jax: 0.10.0
libtpu: 0.0.40
codegen_flags: <defaults>
</compile_context>

<pallas_src>
import jax
import jax.numpy as jnp
from jax.experimental import pallas as pl
from jax.experimental.pallas import tpu as pltpu


def _copy_kernel(x_ref, o_ref):
    # Straight lane-dense tile copy; the squeeze itself is done for free by
    # wrapper-side reshapes (metadata only).
    o_ref[...] = x_ref[...]


def _sublane_tile(dtype) -> int:
    """Native sublane tile for the dtype: 8 (32-bit), 16 (16-bit), 32 (8-bit)."""
    itemsize = jnp.dtype(dtype).itemsize
    return max(8, 32 // max(1, itemsize))


_MAX_COLS = 4096          # wide lane-dense cols: unmasked vst, big DMAs
_BLOCK_BUDGET = 6 << 20   # ~6 MiB per block: v7x-safe (4x block ~= 24 MiB VMEM)


def _choose_2d_layout(total: int) -> tuple[int, int]:
    """Factor `total` into (rows, cols) with cols a wide multiple of 128.

    Caller guarantees total % 128 == 0.  Bias toward wide cols (up to 4096):
    lane-dense output width is the biggest measured store-throughput lever.
    """
    cols = 128
    while cols * 2 <= _MAX_COLS and total % (cols * 2) == 0:
        cols *= 2
    return total // cols, cols


def _choose_block_rows(rows: int, cols: int, itemsize: int, sublane: int) -> int:
    """Row-block sizing under the ~6 MiB budget.

    - Whole slab as one block if it fits (single grid step; full-extent dims
      are always layout-legal).
    - Otherwise block_rows is a multiple of the dtype's sublane tile, the
      grid uses cdiv (Pallas masks the partial tail block), and the step
      count is rounded up to an even number so v7x's two TensorCores can both
      drive the copy.
    """
    row_bytes = cols * itemsize
    max_rows = max(sublane, (_BLOCK_BUDGET // row_bytes) // sublane * sublane)
    if rows <= max_rows:
        return rows  # single full block, <= budget by construction

    steps = pl.cdiv(rows, max_rows)
    if steps % 2 == 1:
        steps += 1  # even step count -> both v7x TCs share the "parallel" axis
    block_rows = pl.cdiv(rows, steps)
    block_rows = ((block_rows + sublane - 1) // sublane) * sublane
    return min(max_rows, block_rows)


def _pallas_lane_dense_copy(x_flat_2d: jax.Array) -> jax.Array:
    rows, cols = x_flat_2d.shape
    itemsize = jnp.dtype(x_flat_2d.dtype).itemsize
    sublane = _sublane_tile(x_flat_2d.dtype)

    block_rows = _choose_block_rows(rows, cols, itemsize, sublane)
    grid = (pl.cdiv(rows, block_rows),)

    block_bytes = block_rows * cols * itemsize
    # 2 buffers x (in + out) x block + headroom; clamp to stay inside v7x's
    # 64 MiB physical VMEM while comfortably above v5e's 16 MiB default scope.
    vmem_limit = int(min(48 << 20, max(32 << 20, 4 * block_bytes + (8 << 20))))

    return pl.pallas_call(
        _copy_kernel,
        out_shape=jax.ShapeDtypeStruct((rows, cols), x_flat_2d.dtype),
        grid=grid,
        in_specs=[pl.BlockSpec((block_rows, cols), lambda i: (i, 0))],
        out_specs=pl.BlockSpec((block_rows, cols), lambda i: (i, 0)),
        compiler_params=pltpu.CompilerParams(
            # Mem-bound copy: shard the grid across both TensorCores on v7x.
            dimension_semantics=("parallel",),
            vmem_limit_bytes=vmem_limit,
        ),
        # Pure HBM traffic, zero FLOPs: helps XLA schedule around this call.
        cost_estimate=pl.CostEstimate(
            flops=0,
            transcendentals=0,
            bytes_accessed=2 * rows * cols * itemsize,
        ),
    )(x_flat_2d)


def squeeze_pallas(x: jax.Array, dim: int, *,
                   use_copy_kernel: bool = False) -> jax.Array:
    """Pallas/JAX equivalent of torch.Tensor.squeeze(dim).

    Default (`use_copy_kernel=False`) is the recommended zero-cost path:
    squeeze is pure metadata, so jnp.squeeze moves no data.  Setting
    `use_copy_kernel=True` routes the bytes through a lane-dense tiled Pallas
    copy kernel (useful only as a fusion anchor / demonstration).
    """
    ndim_in = x.ndim
    dim = dim % ndim_in

    if x.shape[dim] != 1:
        # PyTorch: squeezing a non-size-1 dim is the identity.
        return x

    out_shape = tuple(s for i, s in enumerate(x.shape) if i != dim)

    if not use_copy_kernel:
        # Free metadata-only path (no HBM traffic, no kernel launch).
        return jnp.squeeze(x, axis=dim)

    total = int(x.size)
    if total == 0 or total % 128 != 0:
        # A non-128-multiple slab would force all-masked partial stores;
        # the metadata path is free, so just use it.
        return jnp.squeeze(x, axis=dim)

    rows, cols = _choose_2d_layout(total)
    x_flat = jnp.reshape(x, (rows, cols))          # metadata-only
    y_flat = _pallas_lane_dense_copy(x_flat)
    return jnp.reshape(y_flat, out_shape)          # metadata-only


if __name__ == "__main__":
    key = jax.random.PRNGKey(0)

    # Shape consistent with how Squeeze is used in changemask:
    # a single-channel NCHW feature map, squeeze the channel dim.
    N, C, H, W = 2, 1, 16, 16
    dim = 1
    x = jax.random.normal(key, (N, C, H, W), dtype=jnp.float32)

    # Recommended zero-cost path.
    y_fast = jax.block_until_ready(squeeze_pallas(x, dim))

    # Pallas copy-kernel path (single-block case).
    y_kernel = jax.block_until_ready(squeeze_pallas(x, dim, use_copy_kernel=True))

    y_ref = jnp.squeeze(x, axis=dim)
    assert y_fast.shape == y_kernel.shape == y_ref.shape == (N, H, W)
    assert y_fast.dtype == y_kernel.dtype == x.dtype
    assert bool(jnp.array_equal(y_fast, y_ref))
    assert bool(jnp.array_equal(y_kernel, y_ref))

    # Larger slab (> block budget) -> multi-step, even "parallel" grid.
    xb = jax.random.normal(key, (2, 1, 1024, 1024), dtype=jnp.float32)
    yb = jax.block_until_ready(squeeze_pallas(xb, 1, use_copy_kernel=True))
    assert yb.shape == (2, 1024, 1024)
    assert bool(jnp.array_equal(yb, jnp.squeeze(xb, axis=1)))

    # Packed dtype (bf16) -> sublane-tile-aligned blocks.
    xh = jax.random.normal(key, (2, 1, 64, 128), dtype=jnp.bfloat16)
    yh = jax.block_until_ready(squeeze_pallas(xh, 1, use_copy_kernel=True))
    assert yh.shape == (2, 64, 128) and yh.dtype == jnp.bfloat16
    assert bool(jnp.array_equal(yh, jnp.squeeze(xh, axis=1)))

    # Negative dim + awkward (non-128-multiple) total -> metadata fallback.
    xo = jax.random.normal(key, (3, 5, 7, 1), dtype=jnp.float32)
    yo = jax.block_until_ready(squeeze_pallas(xo, -1, use_copy_kernel=True))
    assert yo.shape == (3, 5, 7)
    assert bool(jnp.array_equal(yo, jnp.squeeze(xo, axis=-1)))

    # Identity case (squeezing a non-size-1 dim is a no-op in PyTorch).
    x2 = jax.random.normal(key, (2, 4, 16, 16), dtype=jnp.float32)
    y2 = jax.block_until_ready(squeeze_pallas(x2, 1, use_copy_kernel=True))
    assert y2.shape == x2.shape and bool(jnp.array_equal(y2, x2))

    print("KERNEL_OK")
</pallas_src>

<mosaic_0001>
module attributes {stable_mosaic.version = 11 : i64} {
  func.func @_copy_kernel(%arg0: i32, %arg1: memref<1x512xf32, #tpu.memory_space<vmem>>, %arg2: memref<1x512xf32, #tpu.memory_space<vmem>>) attributes {dimension_semantics = [#tpu.dimension_semantics<parallel>], iteration_bounds = array<i64: 1>, scalar_prefetch = 0 : i64, scratch_operands = 0 : i64, tpu.core_type = #tpu.core_type<tc>, window_params = [{transform_indices = @transform_0, window_bounds = array<i64: 1, 512>}, {transform_indices = @transform_1, window_bounds = array<i64: 1, 512>}]} {
    %c0 = arith.constant 0 : index
    %c0_0 = arith.constant 0 : index
    %0 = vector.load %arg1[%c0, %c0_0] : memref<1x512xf32, #tpu.memory_space<vmem>>, vector<1x512xf32>
    %c0_1 = arith.constant 0 : index
    %c0_2 = arith.constant 0 : index
    %1 = vector.load %arg2[%c0_1, %c0_2] : memref<1x512xf32, #tpu.memory_space<vmem>>, vector<1x512xf32>
    tpu.vector_store %arg2[%c0_1, %c0_2], %0 {strides = array<i32>} : memref<1x512xf32, #tpu.memory_space<vmem>>, vector<1x512xf32>,
    return
  }
  func.func @transform_0(%arg0: i32) -> (i32, i32) {
    %c0_i32 = arith.constant 0 : i32
    %c0_i32_0 = arith.constant 0 : i32
    return %arg0, %c0_i32 : i32, i32
  }
  func.func @transform_1(%arg0: i32) -> (i32, i32) {
    %c0_i32 = arith.constant 0 : i32
    %c0_i32_0 = arith.constant 0 : i32
    return %arg0, %c0_i32 : i32, i32
  }
}

</mosaic_0001>

<llo_original>
// kernel: tpu_custom_call.1
$region0: #{tpu_custom_call.1}
  #allocation0 [shape = 'u32[]', space=smem, size = 0x4, offset = 0x4, fixed_abs, tag = 'smem constant byte address 0x4 - core index']
  #allocation1 [shape = 'u32[144,128]{1,0:T(1,128)}', space=vmem, size = 0x12000, scoped, tag = 'internal scratch']
  %s0 = inlined_call_operand.hbm [shape: f32[1,512], index: 0, kind: input, shape index: {}]
  %s1 = inlined_call_operand.hbm [shape: f32[1,512], index: 1, kind: output, shape index: {}]
  %s2 = sld [smem:[#allocation0]]
  $region18: #{tpu_custom_call.1} parent=0
    _
  %s4 = ssub.s32 1, %s2
  %s5 = scalar_select 0, %s4, %s2
  $region1: #{tpu_custom_call.1} parent=0
    #allocation2 [shape = 'u8[2048]{0}', space=vmem, size = 0x800, scoped, tag = 'input window, operand 0, single buffered']
    #allocation3 [shape = 's32[1]{0}', space=sflag, size = 0x4, scoped, tag = 'scoped memory for tpu_custom_call.1']
    #allocation4 [shape = 's32[1]{0}', space=sflag, size = 0x4, scoped, tag = 'scoped memory for tpu_custom_call.1']
    #allocation5 [shape = 'u8[2048]{0}', space=vmem, size = 0x800, scoped, tag = 'output window, operand 0, single buffered']
    %6 = vsyncpa [#allocation3], 0
    %7 = vsyncpa [#allocation4], 0
    // Predicated region
    $region2: #{tpu_custom_call.1} parent=1 // pred_check
      _
    $region3: #{tpu_custom_call.1} parent=1 // pred_check_branch
      %9 = sbr.rel (0) target = $region5
    $region4: #{tpu_custom_call.1} parent=1 // pred_region
      %s11 = ssub.s32 64, 64
      %12 = vsyncadd [#allocation3], %s11
      %s14 = sshll.u32 [#allocation2], 4
      %s15 = int_to_ptr.vmem [resolvable:$true] %s14
      %17 = dma.hbm_to_vmem [thread:$0]  %s0, 64, %s15, [#allocation3]
    $region5: #{tpu_custom_call.1} parent=1 // pred_fallthru
      _
    // Predicated region
    $region6: #{tpu_custom_call.1} parent=1 // pred_check
      _
    $region7: #{tpu_custom_call.1} parent=1 // pred_check_branch
      %19 = sbr.rel (0) target = $region9
    $region8: #{tpu_custom_call.1} parent=1 // pred_region
      %20 = dma.done [#allocation3], 64
    $region9: #{tpu_custom_call.1} parent=1 // pred_fallthru
      _
    %v21 = vld [vmem:[#allocation2] sm:$0xf]
    %v22 = vlaneseq
    %vm23 = vcmp.ge.s32.totalorder %v22, 0
    %vm24 = vcmp.lt.s32.totalorder %v22, 512
    %vm25 = vmand %vm23, %vm24
    %26 = vst.msk [vmem:[#allocation5] sm:$0xf] %vm25, %v21
    // Predicated region
    $region10: #{tpu_custom_call.1} parent=1 // pred_check
      _
    $region11: #{tpu_custom_call.1} parent=1 // pred_check_branch
      %28 = sbr.rel (0) target = $region13
    $region12: #{tpu_custom_call.1} parent=1 // pred_region
      %s30 = ssub.s32 64, 64
      %31 = vsyncadd [#allocation4], %s30
      %s33 = sshll.u32 [#allocation5], 4
      %s34 = int_to_ptr.vmem [resolvable:$true] %s33
      %36 = dma.vmem_to_hbm [thread:$0]  %s34, 64, %s1, [#allocation4]
    $region13: #{tpu_custom_call.1} parent=1 // pred_fallthru
      _
    // Predicated region
    $region14: #{tpu_custom_call.1} parent=1 // pred_check
      _
    $region15: #{tpu_custom_call.1} parent=1 // pred_check_branch
      %38 = sbr.rel (0) target = $region17
    $region16: #{tpu_custom_call.1} parent=1 // pred_region
      %39 = dma.done [#allocation4], 64
    $region17: #{tpu_custom_call.1} parent=1 // pred_fallthru
      _
    %40 = vsyncpa [#allocation3], 1
    %41 = vsyncpa [#allocation4], 1

</llo_original>
